<compile_context>
chip_gen: v7x
topology: tpu7x:2x2x1
jax: 0.10.0
libtpu: 0.0.40
codegen_flags: <defaults>
</compile_context>

<pallas_src>
import jax
import jax.numpy as jnp
from jax import lax
from jax.experimental import pallas as pl
from jax.experimental.pallas import tpu as pltpu


def _round_up(x, m):
    return ((x + m - 1) // m) * m


def linear_kernel(x_ref, w_ref, b_ref, o_ref):
    # x_ref: (TM, IN), w_ref: (OUT_pad, IN), b_ref: (1, OUT_pad),
    # o_ref: (TM, OUT_pad).
    # Contract the last dim of both operands (x @ W^T) with no transpose;
    # accumulate in f32 on the MXU.
    z = lax.dot_general(
        x_ref[...], w_ref[...],
        dimension_numbers=(((1,), (1,)), ((), ())),
        preferred_element_type=jnp.float32,
    )
    z = z + b_ref[...].astype(jnp.float32)   # broadcast (1, OUT_pad) over rows
    o_ref[...] = z.astype(o_ref.dtype)


def _choose_batch_tile(B, IN, OUT_pad, in_bytes, out_bytes,
                       vmem_budget=24 * 1024 * 1024):
    """Pick the batch tile from an explicit VMEM budget (not a magic cap)."""
    # Resident operands (weight + bias), counted twice for pipeliner buffers.
    resident = 2 * (OUT_pad * IN * in_bytes + OUT_pad * 4)
    # Streamed bytes per batch row: double-buffered x tile + out tile.
    per_row = 2 * (IN * in_bytes + OUT_pad * out_bytes)
    avail = max(vmem_budget - resident, per_row * 8)
    tm = int((avail // per_row) // 8 * 8)
    tm = max(8, min(2048, tm))
    # Keep >= 2 grid steps once the batch allows it, so both v7x TensorCores
    # get work under dimension_semantics=("parallel",).
    if B > 8:
        half = _round_up(-(-B // 2), 8)
        tm = min(tm, max(8, half))
    # Never exceed the (sublane-rounded) batch itself.
    tm = min(tm, _round_up(B, 8))
    return max(8, tm)


def prepare_params(weight, bias, compute_dtype=jnp.float32):
    """One-time parameter prep (hoisted out of the per-call path).

    Zero-pads OUT to a multiple of 128 lanes so output stores are lane-dense.
    Padded weight rows / bias entries are zero; the padded output columns are
    sliced off in the forward, so the result is exact.
    """
    OUT, IN = weight.shape
    OUT_pad = _round_up(OUT, 128)
    w_p = jnp.zeros((OUT_pad, IN), compute_dtype).at[:OUT, :].set(
        weight.astype(compute_dtype))
    b_p = jnp.zeros((1, OUT_pad), jnp.float32).at[0, :OUT].set(
        bias.astype(jnp.float32))
    return w_p, b_p


def softmax_module_forward(x, w_p, b_p, out_features,
                           compute_dtype=jnp.float32):
    """Forward pass of the `SoftMax` module: z = x @ W^T + b (raw logits)."""
    B, IN = x.shape
    OUT_pad, IN_w = w_p.shape
    assert IN == IN_w and b_p.shape == (1, OUT_pad)

    x_c = x.astype(compute_dtype)
    in_bytes = jnp.dtype(compute_dtype).itemsize
    out_bytes = jnp.dtype(x.dtype).itemsize

    TM = _choose_batch_tile(B, IN, OUT_pad, in_bytes, out_bytes)
    grid = (pl.cdiv(B, TM),)

    cost = pl.CostEstimate(
        flops=2 * B * IN * OUT_pad,
        transcendentals=0,
        bytes_accessed=in_bytes * (B * IN + OUT_pad * IN)
        + 4 * OUT_pad + out_bytes * B * OUT_pad,
    )

    out_p = pl.pallas_call(
        linear_kernel,
        out_shape=jax.ShapeDtypeStruct((B, OUT_pad), x.dtype),
        grid_spec=pl.GridSpec(
            grid=grid,
            in_specs=[
                pl.BlockSpec((TM, IN), lambda i: (i, 0)),       # x, unpadded stream
                pl.BlockSpec((OUT_pad, IN), lambda i: (0, 0)),  # W resident
                pl.BlockSpec((1, OUT_pad), lambda i: (0, 0)),   # b resident
            ],
            out_specs=pl.BlockSpec((TM, OUT_pad), lambda i: (i, 0)),
        ),
        compiler_params=pltpu.CompilerParams(
            dimension_semantics=("parallel",),
            vmem_limit_bytes=32 * 1024 * 1024,
        ),
        cost_estimate=cost,
    )(x_c, w_p, b_p)

    # Drop padded output columns (and any masked edge rows are never exposed).
    return out_p[:, :out_features]


if __name__ == "__main__":
    # Small shapes consistent with nn.Linear(input_size, output_size):
    # batch=10 (deliberately not a multiple of the 8-row tile, exercising the
    # cdiv / partial-block path), input_size=64, output_size=10.
    B, IN, OUT = 10, 64, 10

    key = jax.random.PRNGKey(0)
    kx, kw, kb = jax.random.split(key, 3)

    x = jax.random.normal(kx, (B, IN), dtype=jnp.float32)

    # Deterministic parameter init mimicking PyTorch's default:
    # U(-1/sqrt(fan_in), 1/sqrt(fan_in)).
    bound = 1.0 / jnp.sqrt(jnp.float32(IN))
    weight = jax.random.uniform(kw, (OUT, IN), dtype=jnp.float32,
                                minval=-bound, maxval=bound)
    bias = jax.random.uniform(kb, (OUT,), dtype=jnp.float32,
                              minval=-bound, maxval=bound)

    # One-time parameter prep (padding hoisted out of the per-call path).
    w_p, b_p = prepare_params(weight, bias)

    out = softmax_module_forward(x, w_p, b_p, OUT)
    out = jax.block_until_ready(out)

    # Sanity check against plain-JAX reference.
    ref = x @ weight.T + bias
    assert out.shape == (B, OUT)
    assert jnp.allclose(out, ref, atol=1e-4, rtol=1e-4)

    print("KERNEL_OK")
</pallas_src>

<mosaic_0001>
module attributes {stable_mosaic.version = 11 : i64} {
  func.func @linear_kernel(%arg0: i32, %arg1: memref<8x64xf32, #tpu.memory_space<vmem>>, %arg2: memref<128x64xf32, #tpu.memory_space<vmem>>, %arg3: memref<1x128xf32, #tpu.memory_space<vmem>>, %arg4: memref<8x128xf32, #tpu.memory_space<vmem>>) attributes {dimension_semantics = [#tpu.dimension_semantics<parallel>], iteration_bounds = array<i64: 2>, scalar_prefetch = 0 : i64, scratch_operands = 0 : i64, tpu.core_type = #tpu.core_type<tc>, window_params = [{transform_indices = @transform_0, window_bounds = array<i64: 8, 64>}, {pipeline_mode = #tpu.pipeline_mode<synchronous>, transform_indices = @transform_1, window_bounds = array<i64: 128, 64>}, {pipeline_mode = #tpu.pipeline_mode<synchronous>, transform_indices = @transform_2, window_bounds = array<i64: 1, 128>}, {transform_indices = @transform_3, window_bounds = array<i64: 8, 128>}]} {
    %c0 = arith.constant 0 : index
    %c0_0 = arith.constant 0 : index
    %0 = vector.load %arg1[%c0, %c0_0] : memref<8x64xf32, #tpu.memory_space<vmem>>, vector<8x64xf32>
    %c0_1 = arith.constant 0 : index
    %c0_2 = arith.constant 0 : index
    %1 = vector.load %arg2[%c0_1, %c0_2] : memref<128x64xf32, #tpu.memory_space<vmem>>, vector<128x64xf32>
    %cst = arith.constant dense<0.000000e+00> : vector<8x128xf32>
    %2 = tpu.matmul %0, %1, %cst {dimension_numbers = #tpu.dot_dimension_numbers<[1], [1], [0], [0], [0, 0, 1, 0], [], []>} : vector<8x64xf32>, vector<128x64xf32>, vector<8x128xf32> -> vector<8x128xf32>
    %c0_3 = arith.constant 0 : index
    %c0_4 = arith.constant 0 : index
    %3 = vector.load %arg3[%c0_3, %c0_4] : memref<1x128xf32, #tpu.memory_space<vmem>>, vector<1x128xf32>
    %4 = vector.broadcast %3 : vector<1x128xf32> to vector<8x128xf32>
    %5 = arith.addf %2, %4 : vector<8x128xf32>
    %c0_5 = arith.constant 0 : index
    %c0_6 = arith.constant 0 : index
    %6 = vector.load %arg4[%c0_5, %c0_6] : memref<8x128xf32, #tpu.memory_space<vmem>>, vector<8x128xf32>
    tpu.vector_store %arg4[%c0_5, %c0_6], %5 {strides = array<i32>} : memref<8x128xf32, #tpu.memory_space<vmem>>, vector<8x128xf32>,
    return
  }
  func.func @transform_0(%arg0: i32) -> (i32, i32) {
    %c0_i32 = arith.constant 0 : i32
    %c0_i32_0 = arith.constant 0 : i32
    return %arg0, %c0_i32 : i32, i32
  }
  func.func @transform_1(%arg0: i32) -> (i32, i32) {
    %c0_i32 = arith.constant 0 : i32
    %c0_i32_0 = arith.constant 0 : i32
    %c0_i32_1 = arith.constant 0 : i32
    return %c0_i32, %c0_i32_0 : i32, i32
  }
  func.func @transform_2(%arg0: i32) -> (i32, i32) {
    %c0_i32 = arith.constant 0 : i32
    %c0_i32_0 = arith.constant 0 : i32
    %c0_i32_1 = arith.constant 0 : i32
    return %c0_i32, %c0_i32_0 : i32, i32
  }
  func.func @transform_3(%arg0: i32) -> (i32, i32) {
    %c0_i32 = arith.constant 0 : i32
    %c0_i32_0 = arith.constant 0 : i32
    return %arg0, %c0_i32 : i32, i32
  }
}

</mosaic_0001>

<llo_original>
// kernel: tpu_custom_call.1
$region0: #{tpu_custom_call.1}
  #allocation0 [shape = 'u32[]', space=smem, size = 0x4, offset = 0x4, fixed_abs, tag = 'smem constant byte address 0x4 - core index']
  #allocation1 [shape = 'u32[144,128]{1,0:T(1,128)}', space=vmem, size = 0x12000, scoped, tag = 'internal scratch']
  %s0 = inlined_call_operand.vmem [shape: f32[10,64], index: 0, kind: input, shape index: {}]
  %s1 = inlined_call_operand.vmem [shape: f32[128,64], index: 1, kind: input, shape index: {}]
  %s2 = inlined_call_operand.vmem [shape: f32[1,128], index: 2, kind: input, shape index: {}]
  %s3 = inlined_call_operand.hbm [shape: f32[10,128], index: 3, kind: output, shape index: {}]
  %s4 = sld [smem:[#allocation0]]
  $region45: #{tpu_custom_call.1} parent=0
    _
  %s6 = ssub.s32 1, %s4
  %s7 = scalar_select 0, %s6, %s4
  $region1: #{tpu_custom_call.1} parent=0
    #allocation2 [shape = 'u8[8192]{0}', space=vmem, size = 0x2000, scoped, tag = 'output window, operand 0']
    #allocation3 [shape = 's32[2]{0}', space=sflag, size = 0x8, scoped, tag = 'scoped memory for tpu_custom_call.1']
    %8 = vsyncpa [#allocation3], 0
    %s9 = scalar_lea.sflag [#allocation3], 1
    %10 = vsyncpa %s9, 0
    loop: start=0, step=1, limit=4
    $region2: #{tpu_custom_call.1} parent=1 // loop_pre_header
      _
    $region3: #{tpu_custom_call.1} parent=1 // loop_header
      %s12 = sphi 0, %s16
      %p13 = scmp.ge.s32.totalorder %s12, 4
      %s22 = sphi 0, %s24
      %s25 = sphi 0, %s22
      %s26 = sphi 0, %s25
      %s42 = sphi 0, %s26
      %s46 = sphi 0, %s46
      %s48 = sphi 0, %s46
      %s49 = sphi 0, %s48
      %s63 = sphi 0, %s49
      %s67 = sphi 0, %s67
      %s69 = sphi 0, %s67
      %s70 = sphi 0, %s69
      %s84 = sphi 0, %s70
      %s90 = sphi 0, %s92
      %s93 = sphi 0, %s90
      %s94 = sphi 0, %s93
      %s110 = sphi 0, %s94
    $region4: #{tpu_custom_call.1} parent=1 // loop_header_branch
      %15 = sbr.rel (%p13) target = $region8
    $region5: #{tpu_custom_call.1} parent=1 // loop_body
      %s17 = ssub.s32 %s12, 1
      %s18 = ssub.s32 %s12, 2
      %s19 = sadd.s32 %s12, 1
      %s20 = ssub.s32 %s12, %s19
      %p21 = scmp.eq.s32.totalorder %s20, 0
      %s23 = sadd.s32 %s22, 1
      %s24 = scalar_select %p21, %s22, %s23
      %p27 = pneg %p21
      %p28 = scmp.eq.s32.totalorder %s12, 1
      %p29 = por %p27, %p28
      %p30 = scmp.ne.s32.totalorder %s22, %s25
      %p31 = scmp.eq.s32.totalorder %s12, 0
      %p32 = por %p30, %p31
      %p33 = scmp.ne.s32.totalorder %s22, %s25
      %p34 = scmp.eq.s32.totalorder %s17, 1
      %p35 = por %p33, %p34
      %p36 = scmp.ne.s32.totalorder %s25, %s26
      %p37 = scmp.eq.s32.totalorder %s17, 0
      %p38 = por %p36, %p37
      %p39 = scmp.ne.s32.totalorder %s25, %s26
      %p40 = scmp.eq.s32.totalorder %s18, 1
      %p41 = por %p39, %p40
      %p43 = scmp.ne.s32.totalorder %s26, %s42
      %p44 = scmp.eq.s32.totalorder %s18, 0
      %p45 = por %p43, %p44
      %s47 = sadd.s32 %s46, 1
      %p50 = scmp.eq.s32.totalorder %s12, 1
      %p51 = scmp.ne.s32.totalorder %s46, %s48
      %p52 = scmp.eq.s32.totalorder %s12, 0
      %p53 = por %p51, %p52
      %p54 = scmp.ne.s32.totalorder %s46, %s48
      %p55 = scmp.eq.s32.totalorder %s17, 1
      %p56 = por %p54, %p55
      %p57 = scmp.ne.s32.totalorder %s48, %s49
      %p58 = scmp.eq.s32.totalorder %s17, 0
      %p59 = por %p57, %p58
      %p60 = scmp.ne.s32.totalorder %s48, %s49
      %p61 = scmp.eq.s32.totalorder %s18, 1
      %p62 = por %p60, %p61
      %p64 = scmp.ne.s32.totalorder %s49, %s63
      %p65 = scmp.eq.s32.totalorder %s18, 0
      %p66 = por %p64, %p65
      %s68 = sadd.s32 %s67, 1
      %p71 = scmp.eq.s32.totalorder %s12, 1
      %p72 = scmp.ne.s32.totalorder %s67, %s69
      %p73 = scmp.eq.s32.totalorder %s12, 0
      %p74 = por %p72, %p73
      %p75 = scmp.ne.s32.totalorder %s67, %s69
      %p76 = scmp.eq.s32.totalorder %s17, 1
      %p77 = por %p75, %p76
      %p78 = scmp.ne.s32.totalorder %s69, %s70
      %p79 = scmp.eq.s32.totalorder %s17, 0
      %p80 = por %p78, %p79
      %p81 = scmp.ne.s32.totalorder %s69, %s70
      %p82 = scmp.eq.s32.totalorder %s18, 1
      %p83 = por %p81, %p82
      %p85 = scmp.ne.s32.totalorder %s70, %s84
      %p86 = scmp.eq.s32.totalorder %s18, 0
      %p87 = por %p85, %p86
      %s88 = ssub.s32 %s12, %s19
      %p89 = scmp.eq.s32.totalorder %s88, 0
      %s91 = sadd.s32 %s90, 1
      %s92 = scalar_select %p89, %s90, %s91
      %p95 = pneg %p89
      %p96 = scmp.eq.s32.totalorder %s12, 1
      %p97 = por %p95, %p96
      %p98 = scmp.ne.s32.totalorder %s90, %s93
      %p99 = scmp.eq.s32.totalorder %s12, 0
      %p100 = por %p98, %p99
      %p101 = scmp.ne.s32.totalorder %s90, %s93
      %p102 = scmp.eq.s32.totalorder %s17, 1
      %p103 = por %p101, %p102
      %p104 = scmp.ne.s32.totalorder %s93, %s94
      %p105 = scmp.eq.s32.totalorder %s17, 0
      %p106 = por %p104, %p105
      %p107 = scmp.ne.s32.totalorder %s93, %s94
      %p108 = scmp.eq.s32.totalorder %s18, 1
      %p109 = por %p107, %p108
      %p111 = scmp.ne.s32.totalorder %s94, %s110
      %p112 = scmp.eq.s32.totalorder %s18, 0
      %p113 = por %p111, %p112
      %p114 = scmp.le.s32.totalorder 1, %s12
      %p115 = scmp.lt.s32.totalorder %s12, 3
      %p116 = pnand %p114, %p115
      %p117 = pneg %p116
      // Predicated region
      $region9: #{tpu_custom_call.1} parent=5 // pred_check
        _
      $region10: #{tpu_custom_call.1} parent=5 // pred_check_branch
        %119 = sbr.rel (%p116) target = $region12
      $region11: #{tpu_custom_call.1} parent=5 // pred_region
        %s120 = ssub.s32 %s12, 1
        // Predicated region
        $region13: #{tpu_custom_call.1} parent=11 // pred_check
          %p121 = pneg %p59
        $region14: #{tpu_custom_call.1} parent=11 // pred_check_branch
          %123 = sbr.rel (%p121) target = $region16
        $region15: #{tpu_custom_call.1} parent=11 // pred_region
          _
        $region16: #{tpu_custom_call.1} parent=11 // pred_fallthru
          _
        // Predicated region
        $region17: #{tpu_custom_call.1} parent=11 // pred_check
          %p124 = pneg %p80
        $region18: #{tpu_custom_call.1} parent=11 // pred_check_branch
          %126 = sbr.rel (%p124) target = $region20
        $region19: #{tpu_custom_call.1} parent=11 // pred_region
          _
        $region20: #{tpu_custom_call.1} parent=11 // pred_fallthru
          _
      $region12: #{tpu_custom_call.1} parent=5 // pred_fallthru
        _
      %p127 = scmp.lt.s32.totalorder %s12, 2
      // Predicated region
      $region21: #{tpu_custom_call.1} parent=5 // pred_check
        %p128 = pneg %p127
      $region22: #{tpu_custom_call.1} parent=5 // pred_check_branch
        %130 = sbr.rel (%p128) target = $region24
      $region23: #{tpu_custom_call.1} parent=5 // pred_region
        // Predicated region
        $region25: #{tpu_custom_call.1} parent=23 // pred_check
          %p131 = pneg %p32
        $region26: #{tpu_custom_call.1} parent=23 // pred_check_branch
          %133 = sbr.rel (%p131) target = $region28
        $region27: #{tpu_custom_call.1} parent=23 // pred_region
          %p134 = scmp.lt.s32.totalorder %s12, 1
          %s135 = scalar_select %p134, %s12, 1
          %s136 = smul.addr %s135, 8
          %s137 = scalar_lea.vmem %s0, %s136
        $region28: #{tpu_custom_call.1} parent=23 // pred_fallthru
          _
      $region24: #{tpu_custom_call.1} parent=5 // pred_fallthru
        _
      %p138 = scmp.le.s32.totalorder 1, %s12
      %p139 = scmp.lt.s32.totalorder %s12, 3
      %p140 = pnand %p138, %p139
      %p141 = pneg %p140
      // Predicated region
      $region29: #{tpu_custom_call.1} parent=5 // pred_check
        _
      $region30: #{tpu_custom_call.1} parent=5 // pred_check_branch
        %143 = sbr.rel (%p140) target = $region32
      $region31: #{tpu_custom_call.1} parent=5 // pred_region
        %s144 = ssub.s32 %s12, 1
        %p145 = scmp.lt.s32.totalorder %s17, 1
        %s146 = scalar_select %p145, %s17, 1
        %s147 = smul.addr %s146, 8
        %s148 = scalar_lea.vmem %s0, %s147
        %p149 = pneg %p38
        %p150 = pneg %p35
        %p151 = pneg %p59
        %p152 = pneg %p56
        %p153 = pneg %p80
        %p154 = pneg %p77
        %p155 = pneg %p106
        %p156 = pneg %p103
        %s157 = sand.u32 %s93, 1
        %s158 = scalar_lea.sflag [#allocation3], %s157
        %s159 = sand.u32 %s93, 1
        %s160 = smul.addr %s159, 8
        %s161 = scalar_lea.vmem [#allocation2], %s160
        %p162 = scmp.lt.s32.totalorder %s17, 1
        %s163 = scalar_select %p162, %s17, 1
        %s164 = smul.addr %s163, 8
        %s165 = scalar_lea.vmem %s0, %s164
        %v166 = vld [vmem:[%s165] sm:$0xff]
        %v167 = vld [vmem:[%s1] sm:$0xff]
        %v168 = vld [vmem:[%s1 + $0x8] sm:$0xff]
        %v169 = vld [vmem:[%s1 + $0x10] sm:$0xff]
        %v170 = vld [vmem:[%s1 + $0x18] sm:$0xff]
        %v171 = vld [vmem:[%s1 + $0x20] sm:$0xff]
        %v172 = vld [vmem:[%s1 + $0x28] sm:$0xff]
        %v173 = vld [vmem:[%s1 + $0x30] sm:$0xff]
        %v174 = vld [vmem:[%s1 + $0x38] sm:$0xff]
        %v175 = vld [vmem:[%s1 + $0x40] sm:$0xff]
        %v176 = vld [vmem:[%s1 + $0x48] sm:$0xff]
        %v177 = vld [vmem:[%s1 + $0x50] sm:$0xff]
        %v178 = vld [vmem:[%s1 + $0x58] sm:$0xff]
        %v179 = vld [vmem:[%s1 + $0x60] sm:$0xff]
        %v180 = vld [vmem:[%s1 + $0x68] sm:$0xff]
        %v181 = vld [vmem:[%s1 + $0x70] sm:$0xff]
        %v182 = vld [vmem:[%s1 + $0x78] sm:$0xff]
        %v183 = vld [vmem:[%s2] sm:$0x1]
        %v185 = vlaneseq
        %v186 = vshrl.u32 %v185, 7
        %v187 = vsub.s32 0, %v186
        %v188 = vrot.slane %v183, %v187
        %vm190 = vcmask 523264
        %v192 = vsel %vm190, %v166, 0
        %v195 = vsel %vm190, %v167, 0
        %v198 = vsel %vm190, %v168, 0
        %v201 = vsel %vm190, %v169, 0
        %v204 = vsel %vm190, %v170, 0
        %v207 = vsel %vm190, %v171, 0
        %v210 = vsel %vm190, %v172, 0
        %v213 = vsel %vm190, %v173, 0
        %v216 = vsel %vm190, %v174, 0
        %v219 = vsel %vm190, %v175, 0
        %v222 = vsel %vm190, %v176, 0
        %v225 = vsel %vm190, %v177, 0
        %v228 = vsel %vm190, %v178, 0
        %v231 = vsel %vm190, %v179, 0
        %v234 = vsel %vm190, %v180, 0
        %v237 = vsel %vm190, %v181, 0
        %v240 = vsel %vm190, %v182, 0
        %242 = vmatprep.subr.mxu0 0.0
        %243 = vmatpush1.xpose.msra.mxu0 %v195
        %244 = vmatprep.subr.mxu0 0.0
        %245 = vmatpush1.xpose.msra.mxu0 %v198
        %246 = vmatprep.subr.mxu0 0.0
        %247 = vmatpush1.xpose.msra.mxu0 %v201
        %248 = vmatprep.subr.mxu0 0.0
        %249 = vmatpush1.xpose.msra.mxu0 %v204
        %250 = vmatprep.subr.mxu0 0.0
        %251 = vmatpush1.xpose.msra.mxu0 %v207
        %252 = vmatprep.subr.mxu0 0.0
        %253 = vmatpush1.xpose.msra.mxu0 %v210
        %254 = vmatprep.subr.mxu0 0.0
        %255 = vmatpush1.xpose.msra.mxu0 %v213
        %256 = vmatprep.subr.mxu0 0.0
        %257 = vmatpush1.xpose.msra.mxu0 %v216
        %258 = vmatprep.subr.mxu0 0.0
        %259 = vmatpush1.xpose.msra.mxu0 %v219
        %260 = vmatprep.subr.mxu0 0.0
        %261 = vmatpush1.xpose.msra.mxu0 %v222
        %262 = vmatprep.subr.mxu0 0.0
        %263 = vmatpush1.xpose.msra.mxu0 %v225
        %264 = vmatprep.subr.mxu0 0.0
        %265 = vmatpush1.xpose.msra.mxu0 %v228
        %266 = vmatprep.subr.mxu0 0.0
        %267 = vmatpush1.xpose.msra.mxu0 %v231
        %268 = vmatprep.subr.mxu0 0.0
        %269 = vmatpush1.xpose.msra.mxu0 %v234
        %270 = vmatprep.subr.mxu0 0.0
        %271 = vmatpush1.xpose.msra.mxu0 %v237
        %272 = vmatprep.subr.mxu0 0.0
        %273 = vmatpush1.xpose.msra.mxu0 %v240
        %274 = vmatprep.subr.mxu0 0.0
        %275 = vmatpush1.xpose.msra.mxu0 0.0
        %276 = vmatprep.subr.mxu0 0.0
        %277 = vmatpush1.xpose.msra.mxu0 0.0
        %278 = vmatprep.subr.mxu0 0.0
        %279 = vmatpush1.xpose.msra.mxu0 0.0
        %280 = vmatprep.subr.mxu0 0.0
        %281 = vmatpush1.xpose.msra.mxu0 0.0
        %282 = vmatprep.subr.mxu0 0.0
        %283 = vmatpush1.xpose.msra.mxu0 0.0
        %284 = vmatprep.subr.mxu0 0.0
        %285 = vmatpush1.xpose.msra.mxu0 0.0
        %286 = vmatprep.subr.mxu0 0.0
        %287 = vmatpush1.xpose.msra.mxu0 0.0
        %288 = vmatprep.subr.mxu0 0.0
        %289 = vmatpush1.xpose.msra.mxu0 0.0
        %290 = vmatprep.subr.mxu0 0.0
        %291 = vmatpush1.xpose.msra.mxu0 0.0
        %292 = vmatprep.subr.mxu0 0.0
        %293 = vmatpush1.xpose.msra.mxu0 0.0
        %294 = vmatprep.subr.mxu0 0.0
        %295 = vmatpush1.xpose.msra.mxu0 0.0
        %296 = vmatprep.subr.mxu0 0.0
        %297 = vmatpush1.xpose.msra.mxu0 0.0
        %298 = vmatprep.subr.mxu0 0.0
        %299 = vmatpush1.xpose.msra.mxu0 0.0
        %300 = vmatprep.subr.mxu0 0.0
        %301 = vmatpush1.xpose.msra.mxu0 0.0
        %302 = vmatprep.subr.mxu0 0.0
        %303 = vmatpush1.xpose.msra.mxu0 0.0
        %304 = vmatprep.subr.mxu0 0.0
        %305 = vmatpush1.xpose.msra.mxu0 0.0
        %306 = vmatprep.mubr.f32.mxu0 0.0
        %307 = vmatmul.mubr.f32.gmra.mrb[0].mxu0 %v192
        %v308 = vpop.f32.mrb[0].mxu0
        %v309 = vadd.f32 %v188, %v308
        %v310 = vpop.f32.mrb[0].mxu0
        %311 = vdwg.mxu0
        %312 = vst [vmem:[%s161] sm:$0xff] %v309
        %s313 = sand.u32 %s93, 1
        %s314 = scalar_lea.sflag [#allocation3], %s313
        %s315 = sand.u32 %s93, 1
        %s316 = smul.addr %s315, 8
        %s317 = scalar_lea.vmem [#allocation2], %s316
        // Predicated region
        $region33: #{tpu_custom_call.1} parent=31 // pred_check
          %p318 = pneg %p103
        $region34: #{tpu_custom_call.1} parent=31 // pred_check_branch
          %320 = sbr.rel (%p318) target = $region36
        $region35: #{tpu_custom_call.1} parent=31 // pred_region
          %s322 = ssub.s32 128, 128
          %323 = vsyncadd %s314, %s322
          %s324 = smul.addr %s17, 128
          %s325 = scalar_lea.hbm %s3, %s324
          %s327 = sshll.u32 %s317, 4
          %s328 = int_to_ptr.vmem [resolvable:$true] %s327
          %330 = dma.vmem_to_hbm [thread:$0]  %s328, 128, %s325, %s314
        $region36: #{tpu_custom_call.1} parent=31 // pred_fallthru
          _
      $region32: #{tpu_custom_call.1} parent=5 // pred_fallthru
        _
      %p331 = scmp.le.s32.totalorder 2, %s12
      // Predicated region
      $region37: #{tpu_custom_call.1} parent=5 // pred_check
        %p332 = pneg %p331
      $region38: #{tpu_custom_call.1} parent=5 // pred_check_branch
        %334 = sbr.rel (%p332) target = $region40
      $region39: #{tpu_custom_call.1} parent=5 // pred_region
        %s335 = ssub.s32 %s12, 2
        // Predicated region
        $region41: #{tpu_custom_call.1} parent=39 // pred_check
          %p336 = pneg %p109
        $region42: #{tpu_custom_call.1} parent=39 // pred_check_branch
          %338 = sbr.rel (%p336) target = $region44
        $region43: #{tpu_custom_call.1} parent=39 // pred_region
          %s339 = sand.u32 %s94, 1
          %s340 = scalar_lea.sflag [#allocation3], %s339
          %s341 = sand.u32 %s94, 1
          %s342 = smul.addr %s341, 8
          %s343 = scalar_lea.vmem [#allocation2], %s342
          %344 = dma.done %s340, 128
        $region44: #{tpu_custom_call.1} parent=39 // pred_fallthru
          _
      $region40: #{tpu_custom_call.1} parent=5 // pred_fallthru
        _
    $region6: #{tpu_custom_call.1} parent=1 // loop_footer
      %s16 = sadd.s32 1, %s12
    $region7: #{tpu_custom_call.1} parent=1 // loop_footer_branch
      %11 = sbr.rel target = $region3
    $region8: #{tpu_custom_call.1} parent=1 // loop_exit
      _
    %345 = vsyncpa [#allocation3], 1
    %s346 = scalar_lea.sflag [#allocation3], 1
    %347 = vsyncpa %s346, 1

</llo_original>
